<compile_context>
chip_gen: v6e
topology: v6e:2x2x1
jax: 0.10.0
libtpu: 0.0.40
codegen_flags: <defaults>
</compile_context>

<pallas_src>
import functools

import jax
import jax.numpy as jnp
from jax.experimental import pallas as pl
from jax.experimental.pallas import tpu as pltpu


_LANE = 128
_MAX_TILE_GROUPS = 256          # cap lane tile at 32768 lanes
_SPLIT_BYTES = 3 << 20          # split a 1-step grid only if each half >= ~1.5 MiB


# --------------------------------------------------------------------------
# helpers
# --------------------------------------------------------------------------
def _vmem_caps():
    """(physical VMEM bytes, pipeline-buffer budget bytes) for this chip."""
    cap = 64 << 20                      # conservative floor (v7x per-core VMEM)
    try:
        c = int(pltpu.get_tpu_info().vmem_capacity_bytes)
        if c > 0:
            cap = c
    except Exception:
        pass
    budget = min(cap // 4, 24 << 20)    # never assume v6e's 128 MiB on v7x
    return cap, budget


def _vmem_limit(vmem_rows, tile, itemsize):
    cap, _ = _vmem_caps()
    need = vmem_rows * tile * itemsize + (2 << 20)
    return int(min(cap // 2, max(need, 16 << 20)))


def _choose_tile(n, vmem_rows, work_rows, itemsize):
    """Pick (lane_tile, num_steps).

    vmem_rows: (1,128)-rows of VMEM one lane-group needs (incl. double buffers)
    work_rows: (1,128)-rows of HBM traffic one lane-group sees over the call
    """
    _, budget = _vmem_caps()
    groups = -(-n // _LANE)
    per_group_vmem = vmem_rows * itemsize * _LANE
    max_groups = max(1, min(_MAX_TILE_GROUPS, budget // per_group_vmem))
    if groups <= max_groups:
        tile_groups, steps = groups, 1
        # v7x megacore: only split when each half still moves >= ~1.5 MiB of
        # HBM traffic (>> the ~0.35us per-step overhead); tiny problems stay
        # one step (fastest on v5e/v6e's single TensorCore too).
        if tile_groups >= 2 and work_rows * tile_groups * _LANE * itemsize >= _SPLIT_BYTES:
            tile_groups = -(-tile_groups // 2)
            steps = 2
    else:
        tile_groups = max_groups
        steps = -(-groups // tile_groups)
    return tile_groups * _LANE, steps


def _acc_dtype(dtype, entry):
    """Accumulation dtype for the one-count (bit values are 0/1 -> keep exact)."""
    if jnp.dtype(dtype) == jnp.dtype(jnp.float32) or entry <= 256:
        return dtype
    return jnp.float32


def _one_count(src_ref, entry, acc_dtype, out_dtype):
    """cnt = sum over the entry (sublane) axis, row-by-row (tiny live set)."""
    cnt = src_ref[0:1, :].astype(acc_dtype)
    for r in range(1, entry):
        cnt = cnt + src_ref[r:r + 1, :].astype(acc_dtype)
    return cnt.astype(out_dtype)


# --------------------------------------------------------------------------
# single-step kernels (one bit-clock per call)
# --------------------------------------------------------------------------
def _sr_step_masked(sr_ref, xm_ref, oc_ref, new_sr_ref, *, index, entry, acc_dtype):
    """sr_ref (entry,T); xm_ref (2,T) [x; mask]; oc_ref (2,T) [out; cnt]."""
    x = xm_ref[0:1, :]
    m = xm_ref[1:2, :]
    oc_ref[0:1, :] = sr_ref[index:index + 1, :]
    oc_ref[1:2, :] = _one_count(sr_ref, entry, acc_dtype, oc_ref.dtype)
    if entry > 1:
        lo = sr_ref[0:entry - 1, :]
        hi = sr_ref[1:entry, :]
        new_sr_ref[0:entry - 1, :] = lo + m * (hi - lo)
    last = sr_ref[entry - 1:entry, :]
    new_sr_ref[entry - 1:entry, :] = last + m * (x - last)


def _sr_step_unmasked(sr_ref, x_ref, oc_ref, new_sr_ref, *, index, entry, acc_dtype):
    oc_ref[0:1, :] = sr_ref[index:index + 1, :]
    oc_ref[1:2, :] = _one_count(sr_ref, entry, acc_dtype, oc_ref.dtype)
    if entry > 1:
        new_sr_ref[0:entry - 1, :] = sr_ref[1:entry, :]
    new_sr_ref[entry - 1:entry, :] = x_ref[...]


# --------------------------------------------------------------------------
# time-batched kernels (T bit-clocks per call, state resident in VMEM)
# --------------------------------------------------------------------------
def _sr_seq_masked(sr_ref, xm_ref, oc_ref, new_sr_ref, state, *, index, entry, acc_dtype):
    t = pl.program_id(1)

    @pl.when(t == 0)
    def _load():
        state[...] = sr_ref[...]

    x = xm_ref[0:1, :]
    m = xm_ref[1:2, :]
    oc_ref[0:1, :] = state[index:index + 1, :]
    oc_ref[1:2, :] = _one_count(state, entry, acc_dtype, oc_ref.dtype)
    if entry > 1:
        lo = state[0:entry - 1, :]
        hi = state[1:entry, :]
        new_rows = lo + m * (hi - lo)
    last = state[entry - 1:entry, :]
    new_last = last + m * (x - last)
    if entry > 1:
        state[0:entry - 1, :] = new_rows
    state[entry - 1:entry, :] = new_last

    @pl.when(t == pl.num_programs(1) - 1)
    def _store():
        new_sr_ref[...] = state[...]


def _sr_seq_unmasked(sr_ref, x_ref, oc_ref, new_sr_ref, state, *, index, entry, acc_dtype):
    t = pl.program_id(1)

    @pl.when(t == 0)
    def _load():
        state[...] = sr_ref[...]

    oc_ref[0:1, :] = state[index:index + 1, :]
    oc_ref[1:2, :] = _one_count(state, entry, acc_dtype, oc_ref.dtype)
    if entry > 1:
        shifted = state[1:entry, :]
        state[0:entry - 1, :] = shifted
    state[entry - 1:entry, :] = x_ref[...]

    @pl.when(t == pl.num_programs(1) - 1)
    def _store():
        new_sr_ref[...] = state[...]


# --------------------------------------------------------------------------
# wrappers
# --------------------------------------------------------------------------
def shiftreg_forward(sr, x, mask=None, index=0):
    """One ShiftReg bit-clock.  Returns (out, cnt, new_sr)."""
    entry = int(sr.shape[0])
    index = int(index)
    assert 0 <= index < entry, "index out of range for the shift register"
    shape = tuple(x.shape)
    assert tuple(sr.shape[1:]) == shape
    if mask is not None:
        assert tuple(mask.shape) == shape, "enable mask size must match input size"
    n = int(x.size)
    dtype = sr.dtype
    itemsize = jnp.dtype(dtype).itemsize

    masked = mask is not None
    io_rows = 4 if masked else 3                       # xm/x block + out/cnt block
    vmem_rows = 2 * (2 * entry + io_rows)              # double-buffered blocks
    work_rows = 2 * entry + io_rows
    tile, steps = _choose_tile(n, vmem_rows, work_rows, itemsize)
    n_pad = tile * steps
    pad = n_pad - n

    sr_f = sr.reshape(entry, n)
    x_f = x.astype(dtype).reshape(1, n)
    if masked:
        xin = jnp.concatenate([x_f, mask.astype(dtype).reshape(1, n)], axis=0)
        in_rows = 2
    else:
        xin = x_f
        in_rows = 1
    if pad:
        # TODO(synk): keep the register state in the flattened, lane-padded
        # (entry, n_pad) layout across calls (and donate it under jit) to avoid
        # these extra HBM passes and the defensive copy on the in-place alias.
        sr_f = jnp.pad(sr_f, ((0, 0), (0, pad)))
        xin = jnp.pad(xin, ((0, 0), (0, pad)))

    kern = functools.partial(_sr_step_masked if masked else _sr_step_unmasked,
                             index=index, entry=entry,
                             acc_dtype=_acc_dtype(dtype, entry))
    oc, new_sr_f = pl.pallas_call(
        kern,
        out_shape=(jax.ShapeDtypeStruct((2, n_pad), dtype),
                   jax.ShapeDtypeStruct((entry, n_pad), dtype)),
        grid_spec=pltpu.PrefetchScalarGridSpec(
            num_scalar_prefetch=0,
            grid=(steps,),
            in_specs=[pl.BlockSpec((entry, tile), lambda i: (0, i)),
                      pl.BlockSpec((in_rows, tile), lambda i: (0, i))],
            out_specs=[pl.BlockSpec((2, tile), lambda i: (0, i)),
                       pl.BlockSpec((entry, tile), lambda i: (0, i))]),
        input_output_aliases={0: 1},                   # sr updated in place
        compiler_params=pltpu.CompilerParams(
            dimension_semantics=("parallel",),
            vmem_limit_bytes=_vmem_limit(vmem_rows, tile, itemsize)),
    )(sr_f, xin)

    out = oc[0, :n].reshape(shape)
    cnt = oc[1, :n].reshape(shape)
    new_sr = (new_sr_f[:, :n] if pad else new_sr_f).reshape((entry,) + shape)
    return out, cnt, new_sr


def shiftreg_forward_seq(sr, xs, masks=None, index=0):
    """T consecutive ShiftReg bit-clocks in one pallas_call; the register state
    stays resident in VMEM between steps (the dominant HBM term -- read+write
    of the (entry, N) state -- is paid once instead of T times).

    xs    : (T, *shape) bitstream inputs (step t consumes xs[t])
    masks : optional (T, *shape) shift-enable masks
    Returns (outs (T,*shape), cnts (T,*shape), new_sr (entry,*shape)).
    """
    entry = int(sr.shape[0])
    index = int(index)
    assert 0 <= index < entry
    T = int(xs.shape[0])
    shape = tuple(xs.shape[1:])
    assert tuple(sr.shape[1:]) == shape
    if masks is not None:
        assert tuple(masks.shape) == (T,) + shape
    n = 1
    for d in shape:
        n *= int(d)
    dtype = sr.dtype
    itemsize = jnp.dtype(dtype).itemsize

    masked = masks is not None
    io_rows = 4 if masked else 3
    vmem_rows = 2 * (2 * entry + io_rows) + entry       # + resident state scratch
    work_rows = 2 * entry + io_rows * T                  # one state pass + T io passes
    tile, steps = _choose_tile(n, vmem_rows, work_rows, itemsize)
    n_pad = tile * steps
    pad = n_pad - n

    sr_f = sr.reshape(entry, n)
    xs_f = xs.astype(dtype).reshape(T, 1, n)
    if masked:
        xin = jnp.concatenate([xs_f, masks.astype(dtype).reshape(T, 1, n)], axis=1)
        in_rows = 2
    else:
        xin = xs_f
        in_rows = 1
    if pad:
        sr_f = jnp.pad(sr_f, ((0, 0), (0, pad)))
        xin = jnp.pad(xin, ((0, 0), (0, 0), (0, pad)))

    kern = functools.partial(_sr_seq_masked if masked else _sr_seq_unmasked,
                             index=index, entry=entry,
                             acc_dtype=_acc_dtype(dtype, entry))
    oc, new_sr_f = pl.pallas_call(
        kern,
        out_shape=(jax.ShapeDtypeStruct((T, 2, n_pad), dtype),
                   jax.ShapeDtypeStruct((entry, n_pad), dtype)),
        grid_spec=pltpu.PrefetchScalarGridSpec(
            num_scalar_prefetch=0,
            grid=(steps, T),
            in_specs=[pl.BlockSpec((entry, tile), lambda i, t: (0, i)),
                      pl.BlockSpec((None, in_rows, tile), lambda i, t: (t, 0, i))],
            out_specs=[pl.BlockSpec((None, 2, tile), lambda i, t: (t, 0, i)),
                       pl.BlockSpec((entry, tile), lambda i, t: (0, i))],
            scratch_shapes=[pltpu.VMEM((entry, tile), dtype)]),
        input_output_aliases={0: 1},
        compiler_params=pltpu.CompilerParams(
            dimension_semantics=("parallel", "arbitrary"),
            vmem_limit_bytes=_vmem_limit(vmem_rows, tile, itemsize)),
    )(sr_f, xin)

    outs = oc[:, 0, :n].reshape((T,) + shape)
    cnts = oc[:, 1, :n].reshape((T,) + shape)
    new_sr = (new_sr_f[:, :n] if pad else new_sr_f).reshape((entry,) + shape)
    return outs, cnts, new_sr


def shiftreg_init_state(entry, shape, dtype=jnp.float32):
    """Matches the module's first-call init: sr[i] = i % 2, broadcast over shape."""
    vals = jnp.arange(entry, dtype=jnp.float32) % 2
    return jnp.broadcast_to(vals.reshape((entry,) + (1,) * len(shape)),
                            (entry,) + tuple(shape)).astype(dtype)


def _shiftreg_ref(sr, x, mask, index):
    """Pure-JAX reference for correctness checking."""
    out = sr[index]
    cnt = jnp.sum(sr, axis=0)
    sr_shift = jnp.roll(sr, -1, axis=0).at[-1].set(x.astype(sr.dtype))
    if mask is None:
        new_sr = sr_shift
    else:
        m = mask.astype(sr.dtype)
        new_sr = m * sr_shift + (1 - m) * sr
    return out, cnt, new_sr


# --------------------------------------------------------------------------
# test
# --------------------------------------------------------------------------
if __name__ == "__main__":
    ENTRY = 8
    INDEX = 3
    shape = (2, 4, 16, 16)

    key = jax.random.PRNGKey(0)
    k_x, k_m, k_xs, k_ms = jax.random.split(key, 4)
    x = jax.random.bernoulli(k_x, 0.5, shape).astype(jnp.float32)
    mask = jax.random.bernoulli(k_m, 0.5, shape).astype(jnp.float32)
    sr0 = shiftreg_init_state(ENTRY, shape)

    def close(a, b):
        return bool(jnp.allclose(a.astype(jnp.float32), b.astype(jnp.float32)))

    # --- single step, masked ------------------------------------------------
    out, cnt, new_sr = shiftreg_forward(sr0, x, mask=mask, index=INDEX)
    jax.block_until_ready((out, cnt, new_sr))
    r_out, r_cnt, r_sr = _shiftreg_ref(sr0, x, mask, INDEX)
    assert close(out, r_out) and close(cnt, r_cnt) and close(new_sr, r_sr)

    # --- single step, unmasked, chained on the new state ---------------------
    out2, cnt2, new_sr2 = shiftreg_forward(new_sr, x, mask=None, index=0)
    jax.block_until_ready((out2, cnt2, new_sr2))
    r_out2, r_cnt2, r_sr2 = _shiftreg_ref(r_sr, x, None, 0)
    assert close(out2, r_out2) and close(cnt2, r_cnt2) and close(new_sr2, r_sr2)

    # --- time-batched (T bit-clocks per call), masked -------------------------
    T = 8
    xs = jax.random.bernoulli(k_xs, 0.5, (T,) + shape).astype(jnp.float32)
    ms = jax.random.bernoulli(k_ms, 0.5, (T,) + shape).astype(jnp.float32)
    outs, cnts, sr_T = shiftreg_forward_seq(sr0, xs, masks=ms, index=INDEX)
    jax.block_until_ready((outs, cnts, sr_T))
    s = sr0
    for t in range(T):
        ro, rc, s = _shiftreg_ref(s, xs[t], ms[t], INDEX)
        assert close(outs[t], ro) and close(cnts[t], rc)
    assert close(sr_T, s)

    # --- time-batched, unmasked, chained -------------------------------------
    outs_u, cnts_u, sr_U = shiftreg_forward_seq(sr_T, xs, masks=None, index=0)
    jax.block_until_ready((outs_u, cnts_u, sr_U))
    for t in range(T):
        ro, rc, s = _shiftreg_ref(s, xs[t], None, 0)
        assert close(outs_u[t], ro) and close(cnts_u[t], rc)
    assert close(sr_U, s)

    # --- bfloat16 storage (halves HBM traffic; bit values / small counts exact)
    sr0_bf = sr0.astype(jnp.bfloat16)
    x_bf = x.astype(jnp.bfloat16)
    m_bf = mask.astype(jnp.bfloat16)
    out_b, cnt_b, new_sr_b = shiftreg_forward(sr0_bf, x_bf, mask=m_bf, index=INDEX)
    jax.block_until_ready((out_b, cnt_b, new_sr_b))
    rb_out, rb_cnt, rb_sr = _shiftreg_ref(sr0_bf, x_bf, m_bf, INDEX)
    assert close(out_b, rb_out) and close(cnt_b, rb_cnt) and close(new_sr_b, rb_sr)

    print("KERNEL_OK")
</pallas_src>

<mosaic_0001>
module attributes {stable_mosaic.version = 11 : i64} {
  func.func @_sr_step_masked(%arg0: i32, %arg1: memref<8x2048xf32, #tpu.memory_space<vmem>>, %arg2: memref<2x2048xf32, #tpu.memory_space<vmem>>, %arg3: memref<2x2048xf32, #tpu.memory_space<vmem>>, %arg4: memref<8x2048xf32, #tpu.memory_space<vmem>>) attributes {dimension_semantics = [#tpu.dimension_semantics<parallel>], iteration_bounds = array<i64: 1>, scalar_prefetch = 0 : i64, scratch_operands = 0 : i64, tpu.core_type = #tpu.core_type<tc>, window_params = [{transform_indices = @transform_0, window_bounds = array<i64: 8, 2048>}, {transform_indices = @transform_1, window_bounds = array<i64: 2, 2048>}, {transform_indices = @transform_2, window_bounds = array<i64: 2, 2048>}, {transform_indices = @transform_3, window_bounds = array<i64: 8, 2048>}]} {
    %c0 = arith.constant 0 : index
    %c0_0 = arith.constant 0 : index
    %0 = vector.load %arg2[%c0, %c0_0] : memref<2x2048xf32, #tpu.memory_space<vmem>>, vector<1x2048xf32>
    %c1 = arith.constant 1 : index
    %c0_1 = arith.constant 0 : index
    %1 = vector.load %arg2[%c1, %c0_1] : memref<2x2048xf32, #tpu.memory_space<vmem>>, vector<1x2048xf32>
    %c3 = arith.constant 3 : index
    %c0_2 = arith.constant 0 : index
    %2 = vector.load %arg1[%c3, %c0_2] : memref<8x2048xf32, #tpu.memory_space<vmem>>, vector<1x2048xf32>
    %c0_3 = arith.constant 0 : index
    %c0_4 = arith.constant 0 : index
    %3 = vector.load %arg3[%c0_3, %c0_4] : memref<2x2048xf32, #tpu.memory_space<vmem>>, vector<1x2048xf32>
    tpu.vector_store %arg3[%c0_3, %c0_4], %2 {strides = array<i32>} : memref<2x2048xf32, #tpu.memory_space<vmem>>, vector<1x2048xf32>,
    %c0_5 = arith.constant 0 : index
    %c0_6 = arith.constant 0 : index
    %4 = vector.load %arg1[%c0_5, %c0_6] : memref<8x2048xf32, #tpu.memory_space<vmem>>, vector<1x2048xf32>
    %c1_7 = arith.constant 1 : index
    %c0_8 = arith.constant 0 : index
    %5 = vector.load %arg1[%c1_7, %c0_8] : memref<8x2048xf32, #tpu.memory_space<vmem>>, vector<1x2048xf32>
    %6 = arith.addf %4, %5 : vector<1x2048xf32>
    %c2 = arith.constant 2 : index
    %c0_9 = arith.constant 0 : index
    %7 = vector.load %arg1[%c2, %c0_9] : memref<8x2048xf32, #tpu.memory_space<vmem>>, vector<1x2048xf32>
    %8 = arith.addf %6, %7 : vector<1x2048xf32>
    %c3_10 = arith.constant 3 : index
    %c0_11 = arith.constant 0 : index
    %9 = vector.load %arg1[%c3_10, %c0_11] : memref<8x2048xf32, #tpu.memory_space<vmem>>, vector<1x2048xf32>
    %10 = arith.addf %8, %9 : vector<1x2048xf32>
    %c4 = arith.constant 4 : index
    %c0_12 = arith.constant 0 : index
    %11 = vector.load %arg1[%c4, %c0_12] : memref<8x2048xf32, #tpu.memory_space<vmem>>, vector<1x2048xf32>
    %12 = arith.addf %10, %11 : vector<1x2048xf32>
    %c5 = arith.constant 5 : index
    %c0_13 = arith.constant 0 : index
    %13 = vector.load %arg1[%c5, %c0_13] : memref<8x2048xf32, #tpu.memory_space<vmem>>, vector<1x2048xf32>
    %14 = arith.addf %12, %13 : vector<1x2048xf32>
    %c6 = arith.constant 6 : index
    %c0_14 = arith.constant 0 : index
    %15 = vector.load %arg1[%c6, %c0_14] : memref<8x2048xf32, #tpu.memory_space<vmem>>, vector<1x2048xf32>
    %16 = arith.addf %14, %15 : vector<1x2048xf32>
    %c7 = arith.constant 7 : index
    %c0_15 = arith.constant 0 : index
    %17 = vector.load %arg1[%c7, %c0_15] : memref<8x2048xf32, #tpu.memory_space<vmem>>, vector<1x2048xf32>
    %18 = arith.addf %16, %17 : vector<1x2048xf32>
    %c1_16 = arith.constant 1 : index
    %c0_17 = arith.constant 0 : index
    %19 = vector.load %arg3[%c1_16, %c0_17] : memref<2x2048xf32, #tpu.memory_space<vmem>>, vector<1x2048xf32>
    tpu.vector_store %arg3[%c1_16, %c0_17], %18 {strides = array<i32>} : memref<2x2048xf32, #tpu.memory_space<vmem>>, vector<1x2048xf32>,
    %c0_18 = arith.constant 0 : index
    %c0_19 = arith.constant 0 : index
    %20 = vector.load %arg1[%c0_18, %c0_19] : memref<8x2048xf32, #tpu.memory_space<vmem>>, vector<7x2048xf32>
    %c1_20 = arith.constant 1 : index
    %c0_21 = arith.constant 0 : index
    %21 = vector.load %arg1[%c1_20, %c0_21] : memref<8x2048xf32, #tpu.memory_space<vmem>>, vector<7x2048xf32>
    %22 = arith.subf %21, %20 : vector<7x2048xf32>
    %23 = vector.broadcast %1 : vector<1x2048xf32> to vector<7x2048xf32>
    %24 = arith.mulf %23, %22 : vector<7x2048xf32>
    %25 = arith.addf %20, %24 : vector<7x2048xf32>
    %c0_22 = arith.constant 0 : index
    %c0_23 = arith.constant 0 : index
    %26 = vector.load %arg4[%c0_22, %c0_23] : memref<8x2048xf32, #tpu.memory_space<vmem>>, vector<7x2048xf32>
    tpu.vector_store %arg4[%c0_22, %c0_23], %25 {strides = array<i32>} : memref<8x2048xf32, #tpu.memory_space<vmem>>, vector<7x2048xf32>,
    %c7_24 = arith.constant 7 : index
    %c0_25 = arith.constant 0 : index
    %27 = vector.load %arg1[%c7_24, %c0_25] : memref<8x2048xf32, #tpu.memory_space<vmem>>, vector<1x2048xf32>
    %28 = arith.subf %0, %27 : vector<1x2048xf32>
    %29 = arith.mulf %1, %28 : vector<1x2048xf32>
    %30 = arith.addf %27, %29 : vector<1x2048xf32>
    %c7_26 = arith.constant 7 : index
    %c0_27 = arith.constant 0 : index
    %31 = vector.load %arg4[%c7_26, %c0_27] : memref<8x2048xf32, #tpu.memory_space<vmem>>, vector<1x2048xf32>
    tpu.vector_store %arg4[%c7_26, %c0_27], %30 {strides = array<i32>} : memref<8x2048xf32, #tpu.memory_space<vmem>>, vector<1x2048xf32>,
    return
  }
  func.func @transform_0(%arg0: i32) -> (i32, i32) {
    %c0_i32 = arith.constant 0 : i32
    %c0_i32_0 = arith.constant 0 : i32
    return %c0_i32, %arg0 : i32, i32
  }
  func.func @transform_1(%arg0: i32) -> (i32, i32) {
    %c0_i32 = arith.constant 0 : i32
    %c0_i32_0 = arith.constant 0 : i32
    return %c0_i32, %arg0 : i32, i32
  }
  func.func @transform_2(%arg0: i32) -> (i32, i32) {
    %c0_i32 = arith.constant 0 : i32
    %c0_i32_0 = arith.constant 0 : i32
    return %c0_i32, %arg0 : i32, i32
  }
  func.func @transform_3(%arg0: i32) -> (i32, i32) {
    %c0_i32 = arith.constant 0 : i32
    %c0_i32_0 = arith.constant 0 : i32
    return %c0_i32, %arg0 : i32, i32
  }
}

</mosaic_0001>

<llo_original>
// kernel: tpu_custom_call.1
$region0: #{tpu_custom_call.1}
  #allocation0 [shape = 'u32[]', space=smem, size = 0x4, offset = 0x4, fixed_abs, tag = 'smem constant byte address 0x4 - core index']
  #allocation1 [shape = 'u32[144,128]{1,0:T(1,128)}', space=vmem, size = 0x12000, scoped, tag = 'internal scratch']
  %s0 = inlined_call_operand.hbm [shape: f32[8,2048], index: 0, kind: input, shape index: {}, may-alias: {0,3}]
  %s1 = inlined_call_operand.vmem [shape: f32[2,2048], index: 1, kind: input, shape index: {}]
  %s2 = inlined_call_operand.hbm [shape: f32[2,2048], index: 2, kind: output, shape index: {0}]
  %s3 = inlined_call_operand.hbm [shape: f32[8,2048], index: 3, kind: output, shape index: {1}, may-alias: {0,3}]
  %4 = xla_tuple %s2, %s3
  %s5 = sld [smem:[#allocation0]]
  $region30: #{tpu_custom_call.1} parent=0
    _
  %s7 = ssub.s32 1, %s5
  %s8 = scalar_select 0, %s7, %s5
  $region1: #{tpu_custom_call.1} parent=0
    #allocation2 [shape = 'u8[65536]{0}', space=vmem, size = 0x10000, scoped, tag = 'input window, operand 0, single buffered']
    #allocation3 [shape = 's32[1]{0}', space=sflag, size = 0x4, scoped, tag = 'scoped memory for tpu_custom_call.1']
    #allocation4 [shape = 's32[1]{0}', space=sflag, size = 0x4, scoped, tag = 'scoped memory for tpu_custom_call.1']
    #allocation5 [shape = 'u8[16384]{0}', space=vmem, size = 0x4000, scoped, tag = 'output window, operand 0, single buffered']
    #allocation6 [shape = 'u8[65536]{0}', space=vmem, size = 0x10000, scoped, tag = 'output window, operand 1, single buffered']
    #allocation7 [shape = 's32[1]{0}', space=sflag, size = 0x4, scoped, tag = 'scoped memory for tpu_custom_call.1']
    %9 = vsyncpa [#allocation3], 0
    %10 = vsyncpa [#allocation4], 0
    %11 = vsyncpa [#allocation7], 0
    // Predicated region
    $region2: #{tpu_custom_call.1} parent=1 // pred_check
      _
    $region3: #{tpu_custom_call.1} parent=1 // pred_check_branch
      %13 = sbr.rel (0) target = $region5
    $region4: #{tpu_custom_call.1} parent=1 // pred_region
      %s15 = ssub.s32 2048, 2048
      %16 = vsyncadd [#allocation3], %s15
      %s18 = sshll.u32 [#allocation2], 4
      %s19 = int_to_ptr.vmem [resolvable:$true] %s18
      %21 = dma.hbm_to_vmem [thread:$0]  %s0, 2048, %s19, [#allocation3]
    $region5: #{tpu_custom_call.1} parent=1 // pred_fallthru
      _
    // Predicated region
    $region6: #{tpu_custom_call.1} parent=1 // pred_check
      _
    $region7: #{tpu_custom_call.1} parent=1 // pred_check_branch
      %23 = sbr.rel (0) target = $region9
    $region8: #{tpu_custom_call.1} parent=1 // pred_region
      _
    $region9: #{tpu_custom_call.1} parent=1 // pred_fallthru
      _
    // Predicated region
    $region10: #{tpu_custom_call.1} parent=1 // pred_check
      _
    $region11: #{tpu_custom_call.1} parent=1 // pred_check_branch
      %25 = sbr.rel (0) target = $region13
    $region12: #{tpu_custom_call.1} parent=1 // pred_region
      %26 = dma.done [#allocation3], 2048
    $region13: #{tpu_custom_call.1} parent=1 // pred_fallthru
      _
    %v27 = vld [vmem:[%s1] ss:$2 sm:$0xff]
    %s28 = scalar_lea.vmem %s1, 16
    %v29 = vld [vmem:[%s28] ss:$2 sm:$0xff]
    %s30 = scalar_lea.vmem %s1, 1
    %v31 = vld [vmem:[%s30] ss:$2 sm:$0xff]
    %s32 = scalar_lea.vmem %s1, 17
    %v33 = vld [vmem:[%s32] ss:$2 sm:$0xff]
    %s34 = scalar_lea.vmem [#allocation2], 3
    %v35 = vld [vmem:[%s34] ss:$8 sm:$0xf]
    %v36 = vld [vmem:[%s34] ss:$8 sm:$0xf0]
    %v37 = vor.u32 %v35, %v36
    %s38 = scalar_lea.vmem [#allocation2], 67
    %v39 = vld [vmem:[%s38] ss:$8 sm:$0xf]
    %v40 = vld [vmem:[%s38] ss:$8 sm:$0xf0]
    %v41 = vor.u32 %v39, %v40
    %42 = vst [vmem:[#allocation5] ss:$2 sm:$0xff] %v37
    %s43 = scalar_lea.vmem [#allocation5], 16
    %44 = vst [vmem:[%s43] ss:$2 sm:$0xff] %v41
    %v45 = vld [vmem:[#allocation2] ss:$8 sm:$0xf]
    %v46 = vld [vmem:[#allocation2] ss:$8 sm:$0xf0]
    %v47 = vor.u32 %v45, %v46
    %s48 = scalar_lea.vmem [#allocation2], 64
    %v49 = vld [vmem:[%s48] ss:$8 sm:$0xf]
    %v50 = vld [vmem:[%s48] ss:$8 sm:$0xf0]
    %v51 = vor.u32 %v49, %v50
    %s52 = scalar_lea.vmem [#allocation2], 1
    %v53 = vld [vmem:[%s52] ss:$8 sm:$0xf]
    %v54 = vld [vmem:[%s52] ss:$8 sm:$0xf0]
    %v55 = vor.u32 %v53, %v54
    %s56 = scalar_lea.vmem [#allocation2], 65
    %v57 = vld [vmem:[%s56] ss:$8 sm:$0xf]
    %v58 = vld [vmem:[%s56] ss:$8 sm:$0xf0]
    %v59 = vor.u32 %v57, %v58
    %v60 = vadd.f32 %v47, %v55
    %v61 = vadd.f32 %v51, %v59
    %s62 = scalar_lea.vmem [#allocation2], 2
    %v63 = vld [vmem:[%s62] ss:$8 sm:$0xf]
    %v64 = vld [vmem:[%s62] ss:$8 sm:$0xf0]
    %v65 = vor.u32 %v63, %v64
    %s66 = scalar_lea.vmem [#allocation2], 66
    %v67 = vld [vmem:[%s66] ss:$8 sm:$0xf]
    %v68 = vld [vmem:[%s66] ss:$8 sm:$0xf0]
    %v69 = vor.u32 %v67, %v68
    %v70 = vadd.f32 %v60, %v65
    %v71 = vadd.f32 %v61, %v69
    %v72 = vld [vmem:[%s34] ss:$8 sm:$0xf]
    %v73 = vld [vmem:[%s34] ss:$8 sm:$0xf0]
    %v74 = vor.u32 %v72, %v73
    %v75 = vld [vmem:[%s38] ss:$8 sm:$0xf]
    %v76 = vld [vmem:[%s38] ss:$8 sm:$0xf0]
    %v77 = vor.u32 %v75, %v76
    %v78 = vadd.f32 %v70, %v74
    %v79 = vadd.f32 %v71, %v77
    %s80 = scalar_lea.vmem [#allocation2], 4
    %v81 = vld [vmem:[%s80] ss:$8 sm:$0xf]
    %v82 = vld [vmem:[%s80] ss:$8 sm:$0xf0]
    %v83 = vor.u32 %v81, %v82
    %s84 = scalar_lea.vmem [#allocation2], 68
    %v85 = vld [vmem:[%s84] ss:$8 sm:$0xf]
    %v86 = vld [vmem:[%s84] ss:$8 sm:$0xf0]
    %v87 = vor.u32 %v85, %v86
    %v88 = vadd.f32 %v78, %v83
    %v89 = vadd.f32 %v79, %v87
    %s90 = scalar_lea.vmem [#allocation2], 5
    %v91 = vld [vmem:[%s90] ss:$8 sm:$0xf]
    %v92 = vld [vmem:[%s90] ss:$8 sm:$0xf0]
    %v93 = vor.u32 %v91, %v92
    %s94 = scalar_lea.vmem [#allocation2], 69
    %v95 = vld [vmem:[%s94] ss:$8 sm:$0xf]
    %v96 = vld [vmem:[%s94] ss:$8 sm:$0xf0]
    %v97 = vor.u32 %v95, %v96
    %v98 = vadd.f32 %v88, %v93
    %v99 = vadd.f32 %v89, %v97
    %s100 = scalar_lea.vmem [#allocation2], 6
    %v101 = vld [vmem:[%s100] ss:$8 sm:$0xf]
    %v102 = vld [vmem:[%s100] ss:$8 sm:$0xf0]
    %v103 = vor.u32 %v101, %v102
    %s104 = scalar_lea.vmem [#allocation2], 70
    %v105 = vld [vmem:[%s104] ss:$8 sm:$0xf]
    %v106 = vld [vmem:[%s104] ss:$8 sm:$0xf0]
    %v107 = vor.u32 %v105, %v106
    %v108 = vadd.f32 %v98, %v103
    %v109 = vadd.f32 %v99, %v107
    %s110 = scalar_lea.vmem [#allocation2], 7
    %v111 = vld [vmem:[%s110] ss:$8 sm:$0xf]
    %v112 = vld [vmem:[%s110] ss:$8 sm:$0xf0]
    %v113 = vor.u32 %v111, %v112
    %s114 = scalar_lea.vmem [#allocation2], 71
    %v115 = vld [vmem:[%s114] ss:$8 sm:$0xf]
    %v116 = vld [vmem:[%s114] ss:$8 sm:$0xf0]
    %v117 = vor.u32 %v115, %v116
    %v118 = vadd.f32 %v108, %v113
    %v119 = vadd.f32 %v109, %v117
    %s120 = scalar_lea.vmem [#allocation5], 1
    %121 = vst [vmem:[%s120] ss:$2 sm:$0xff] %v118
    %s122 = scalar_lea.vmem [#allocation5], 17
    %123 = vst [vmem:[%s122] ss:$2 sm:$0xff] %v119
    %v124 = vld [vmem:[#allocation2] sm:$0x7f]
    %v125 = vld [vmem:[#allocation2 + $0x8] sm:$0x7f]
    %v126 = vld [vmem:[#allocation2 + $0x10] sm:$0x7f]
    %v127 = vld [vmem:[#allocation2 + $0x18] sm:$0x7f]
    %v128 = vld [vmem:[#allocation2 + $0x20] sm:$0x7f]
    %v129 = vld [vmem:[#allocation2 + $0x28] sm:$0x7f]
    %v130 = vld [vmem:[#allocation2 + $0x30] sm:$0x7f]
    %v131 = vld [vmem:[#allocation2 + $0x38] sm:$0x7f]
    %v132 = vld [vmem:[#allocation2 + $0x40] sm:$0x7f]
    %v133 = vld [vmem:[#allocation2 + $0x48] sm:$0x7f]
    %v134 = vld [vmem:[#allocation2 + $0x50] sm:$0x7f]
    %v135 = vld [vmem:[#allocation2 + $0x58] sm:$0x7f]
    %v136 = vld [vmem:[#allocation2 + $0x60] sm:$0x7f]
    %v137 = vld [vmem:[#allocation2 + $0x68] sm:$0x7f]
    %v138 = vld [vmem:[#allocation2 + $0x70] sm:$0x7f]
    %v139 = vld [vmem:[#allocation2 + $0x78] sm:$0x7f]
    %v140 = vld [vmem:[#allocation2] sm:$0xfe]
    %v141 = vld [vmem:[#allocation2 + $0x8] sm:$0xfe]
    %v142 = vld [vmem:[#allocation2 + $0x10] sm:$0xfe]
    %v143 = vld [vmem:[#allocation2 + $0x18] sm:$0xfe]
    %v144 = vld [vmem:[#allocation2 + $0x20] sm:$0xfe]
    %v145 = vld [vmem:[#allocation2 + $0x28] sm:$0xfe]
    %v146 = vld [vmem:[#allocation2 + $0x30] sm:$0xfe]
    %v147 = vld [vmem:[#allocation2 + $0x38] sm:$0xfe]
    %v148 = vld [vmem:[#allocation2 + $0x40] sm:$0xfe]
    %v149 = vld [vmem:[#allocation2 + $0x48] sm:$0xfe]
    %v150 = vld [vmem:[#allocation2 + $0x50] sm:$0xfe]
    %v151 = vld [vmem:[#allocation2 + $0x58] sm:$0xfe]
    %v152 = vld [vmem:[#allocation2 + $0x60] sm:$0xfe]
    %v153 = vld [vmem:[#allocation2 + $0x68] sm:$0xfe]
    %v154 = vld [vmem:[#allocation2 + $0x70] sm:$0xfe]
    %v155 = vld [vmem:[#allocation2 + $0x78] sm:$0xfe]
    %v172 = vrot.slane %v124, 7
    %v173 = vrot.slane %v125, 7
    %v174 = vrot.slane %v126, 7
    %v175 = vrot.slane %v127, 7
    %v176 = vrot.slane %v128, 7
    %v177 = vrot.slane %v129, 7
    %v178 = vrot.slane %v130, 7
    %v179 = vrot.slane %v131, 7
    %v180 = vrot.slane %v132, 7
    %v181 = vrot.slane %v133, 7
    %v182 = vrot.slane %v134, 7
    %v183 = vrot.slane %v135, 7
    %v184 = vrot.slane %v136, 7
    %v185 = vrot.slane %v137, 7
    %v186 = vrot.slane %v138, 7
    %v187 = vrot.slane %v139, 7
    %v204 = vsub.f32 %v140, %v172
    %v205 = vsub.f32 %v141, %v173
    %v206 = vsub.f32 %v142, %v174
    %v207 = vsub.f32 %v143, %v175
    %v208 = vsub.f32 %v144, %v176
    %v209 = vsub.f32 %v145, %v177
    %v210 = vsub.f32 %v146, %v178
    %v211 = vsub.f32 %v147, %v179
    %v212 = vsub.f32 %v148, %v180
    %v213 = vsub.f32 %v149, %v181
    %v214 = vsub.f32 %v150, %v182
    %v215 = vsub.f32 %v151, %v183
    %v216 = vsub.f32 %v152, %v184
    %v217 = vsub.f32 %v153, %v185
    %v218 = vsub.f32 %v154, %v186
    %v219 = vsub.f32 %v155, %v187
    %v222 = vlaneseq
    %v223 = vshrl.u32 %v222, 7
    %v224 = vsub.s32 0, %v223
    %v225 = vrot.slane %v31, %v224
    %v226 = vlaneseq
    %v227 = vshrl.u32 %v226, 7
    %v228 = vsub.s32 1, %v227
    %v229 = vrot.slane %v31, %v228
    %v230 = vlaneseq
    %v231 = vshrl.u32 %v230, 7
    %v232 = vsub.s32 2, %v231
    %v233 = vrot.slane %v31, %v232
    %v234 = vlaneseq
    %v235 = vshrl.u32 %v234, 7
    %v236 = vsub.s32 3, %v235
    %v237 = vrot.slane %v31, %v236
    %v238 = vlaneseq
    %v239 = vshrl.u32 %v238, 7
    %v240 = vsub.s32 4, %v239
    %v241 = vrot.slane %v31, %v240
    %v242 = vlaneseq
    %v243 = vshrl.u32 %v242, 7
    %v244 = vsub.s32 5, %v243
    %v245 = vrot.slane %v31, %v244
    %v246 = vlaneseq
    %v247 = vshrl.u32 %v246, 7
    %v248 = vsub.s32 6, %v247
    %v249 = vrot.slane %v31, %v248
    %v250 = vlaneseq
    %v251 = vshrl.u32 %v250, 7
    %v252 = vsub.s32 7, %v251
    %v253 = vrot.slane %v31, %v252
    %v254 = vlaneseq
    %v255 = vshrl.u32 %v254, 7
    %v256 = vsub.s32 0, %v255
    %v257 = vrot.slane %v33, %v256
    %v258 = vlaneseq
    %v259 = vshrl.u32 %v258, 7
    %v260 = vsub.s32 1, %v259
    %v261 = vrot.slane %v33, %v260
    %v262 = vlaneseq
    %v263 = vshrl.u32 %v262, 7
    %v264 = vsub.s32 2, %v263
    %v265 = vrot.slane %v33, %v264
    %v266 = vlaneseq
    %v267 = vshrl.u32 %v266, 7
    %v268 = vsub.s32 3, %v267
    %v269 = vrot.slane %v33, %v268
    %v270 = vlaneseq
    %v271 = vshrl.u32 %v270, 7
    %v272 = vsub.s32 4, %v271
    %v273 = vrot.slane %v33, %v272
    %v274 = vlaneseq
    %v275 = vshrl.u32 %v274, 7
    %v276 = vsub.s32 5, %v275
    %v277 = vrot.slane %v33, %v276
    %v278 = vlaneseq
    %v279 = vshrl.u32 %v278, 7
    %v280 = vsub.s32 6, %v279
    %v281 = vrot.slane %v33, %v280
    %v282 = vlaneseq
    %v283 = vshrl.u32 %v282, 7
    %v284 = vsub.s32 7, %v283
    %v285 = vrot.slane %v33, %v284
    %v302 = vmul.f32 %v225, %v204
    %v303 = vmul.f32 %v229, %v205
    %v304 = vmul.f32 %v233, %v206
    %v305 = vmul.f32 %v237, %v207
    %v306 = vmul.f32 %v241, %v208
    %v307 = vmul.f32 %v245, %v209
    %v308 = vmul.f32 %v249, %v210
    %v309 = vmul.f32 %v253, %v211
    %v310 = vmul.f32 %v257, %v212
    %v311 = vmul.f32 %v261, %v213
    %v312 = vmul.f32 %v265, %v214
    %v313 = vmul.f32 %v269, %v215
    %v314 = vmul.f32 %v273, %v216
    %v315 = vmul.f32 %v277, %v217
    %v316 = vmul.f32 %v281, %v218
    %v317 = vmul.f32 %v285, %v219
    %v334 = vrot.slane %v302, 1
    %v335 = vrot.slane %v303, 1
    %v336 = vrot.slane %v304, 1
    %v337 = vrot.slane %v305, 1
    %v338 = vrot.slane %v306, 1
    %v339 = vrot.slane %v307, 1
    %v340 = vrot.slane %v308, 1
    %v341 = vrot.slane %v309, 1
    %v342 = vrot.slane %v310, 1
    %v343 = vrot.slane %v311, 1
    %v344 = vrot.slane %v312, 1
    %v345 = vrot.slane %v313, 1
    %v346 = vrot.slane %v314, 1
    %v347 = vrot.slane %v315, 1
    %v348 = vrot.slane %v316, 1
    %v349 = vrot.slane %v317, 1
    %v366 = vadd.f32 %v124, %v334
    %v367 = vadd.f32 %v125, %v335
    %v368 = vadd.f32 %v126, %v336
    %v369 = vadd.f32 %v127, %v337
    %v370 = vadd.f32 %v128, %v338
    %v371 = vadd.f32 %v129, %v339
    %v372 = vadd.f32 %v130, %v340
    %v373 = vadd.f32 %v131, %v341
    %v374 = vadd.f32 %v132, %v342
    %v375 = vadd.f32 %v133, %v343
    %v376 = vadd.f32 %v134, %v344
    %v377 = vadd.f32 %v135, %v345
    %v378 = vadd.f32 %v136, %v346
    %v379 = vadd.f32 %v137, %v347
    %v380 = vadd.f32 %v138, %v348
    %v381 = vadd.f32 %v139, %v349
    %382 = vst [vmem:[#allocation6] sm:$0x7f] %v366
    %383 = vst [vmem:[#allocation6 + $0x8] sm:$0x7f] %v367
    %384 = vst [vmem:[#allocation6 + $0x10] sm:$0x7f] %v368
    %385 = vst [vmem:[#allocation6 + $0x18] sm:$0x7f] %v369
    %386 = vst [vmem:[#allocation6 + $0x20] sm:$0x7f] %v370
    %387 = vst [vmem:[#allocation6 + $0x28] sm:$0x7f] %v371
    %388 = vst [vmem:[#allocation6 + $0x30] sm:$0x7f] %v372
    %389 = vst [vmem:[#allocation6 + $0x38] sm:$0x7f] %v373
    %390 = vst [vmem:[#allocation6 + $0x40] sm:$0x7f] %v374
    %391 = vst [vmem:[#allocation6 + $0x48] sm:$0x7f] %v375
    %392 = vst [vmem:[#allocation6 + $0x50] sm:$0x7f] %v376
    %393 = vst [vmem:[#allocation6 + $0x58] sm:$0x7f] %v377
    %394 = vst [vmem:[#allocation6 + $0x60] sm:$0x7f] %v378
    %395 = vst [vmem:[#allocation6 + $0x68] sm:$0x7f] %v379
    %396 = vst [vmem:[#allocation6 + $0x70] sm:$0x7f] %v380
    %397 = vst [vmem:[#allocation6 + $0x78] sm:$0x7f] %v381
    %v398 = vld [vmem:[%s110] ss:$8 sm:$0xf]
    %v399 = vld [vmem:[%s110] ss:$8 sm:$0xf0]
    %v400 = vor.u32 %v398, %v399
    %v401 = vld [vmem:[%s114] ss:$8 sm:$0xf]
    %v402 = vld [vmem:[%s114] ss:$8 sm:$0xf0]
    %v403 = vor.u32 %v401, %v402
    %v404 = vsub.f32 %v27, %v400
    %v405 = vsub.f32 %v29, %v403
    %v406 = vmul.f32 %v31, %v404
    %v407 = vmul.f32 %v33, %v405
    %v408 = vadd.f32 %v400, %v406
    %v409 = vadd.f32 %v403, %v407
    %s410 = scalar_lea.vmem [#allocation6], 7
    %411 = vst [vmem:[%s410] ss:$8 sm:$0xf] %v408
    %412 = vst [vmem:[%s410] ss:$8 sm:$0xf0] %v408
    %s413 = scalar_lea.vmem [#allocation6], 71
    %414 = vst [vmem:[%s413] ss:$8 sm:$0xf] %v409
    %415 = vst [vmem:[%s413] ss:$8 sm:$0xf0] %v409
    // Predicated region
    $region14: #{tpu_custom_call.1} parent=1 // pred_check
      _
    $region15: #{tpu_custom_call.1} parent=1 // pred_check_branch
      %417 = sbr.rel (0) target = $region17
    $region16: #{tpu_custom_call.1} parent=1 // pred_region
      %s419 = ssub.s32 512, 512
      %420 = vsyncadd [#allocation4], %s419
      %s422 = sshll.u32 [#allocation5], 4
      %s423 = int_to_ptr.vmem [resolvable:$true] %s422
      %425 = dma.vmem_to_hbm [thread:$0]  %s423, 512, %s2, [#allocation4]
    $region17: #{tpu_custom_call.1} parent=1 // pred_fallthru
      _
    // Predicated region
    $region18: #{tpu_custom_call.1} parent=1 // pred_check
      _
    $region19: #{tpu_custom_call.1} parent=1 // pred_check_branch
      %427 = sbr.rel (0) target = $region21
    $region20: #{tpu_custom_call.1} parent=1 // pred_region
      %s429 = ssub.s32 2048, 2048
      %430 = vsyncadd [#allocation7], %s429
      %s432 = sshll.u32 [#allocation6], 4
      %s433 = int_to_ptr.vmem [resolvable:$true] %s432
      %435 = dma.vmem_to_hbm [thread:$0]  %s433, 2048, %s3, [#allocation7]
    $region21: #{tpu_custom_call.1} parent=1 // pred_fallthru
      _
    // Predicated region
    $region22: #{tpu_custom_call.1} parent=1 // pred_check
      _
    $region23: #{tpu_custom_call.1} parent=1 // pred_check_branch
      %437 = sbr.rel (0) target = $region25
    $region24: #{tpu_custom_call.1} parent=1 // pred_region
      %438 = dma.done [#allocation4], 512
    $region25: #{tpu_custom_call.1} parent=1 // pred_fallthru
      _
    // Predicated region
    $region26: #{tpu_custom_call.1} parent=1 // pred_check
      _
    $region27: #{tpu_custom_call.1} parent=1 // pred_check_branch
      %440 = sbr.rel (0) target = $region29
    $region28: #{tpu_custom_call.1} parent=1 // pred_region
      %441 = dma.done [#allocation7], 2048
    $region29: #{tpu_custom_call.1} parent=1 // pred_fallthru
      _
    %442 = vsyncpa [#allocation3], 1
    %443 = vsyncpa [#allocation4], 1
    %444 = vsyncpa [#allocation7], 1

</llo_original>
